<compile_context>
chip_gen: v7x
topology: tpu7x:2x2x1
jax: 0.10.0
libtpu: 0.0.40
codegen_flags: <defaults>
</compile_context>

<pallas_src>
import math
from functools import partial

import jax
import jax.numpy as jnp
from jax.experimental import pallas as pl
from jax.experimental.pallas import tpu as pltpu


def _attention_kernel(past_ref, curr_ref, mask_ref, w_ref, b_ref,
                      sel_ref, selt_ref, o_ref, *, L, E, H, Bblk):
    f32 = jnp.float32
    cdt = w_ref.dtype                            # compute dtype (bf16 prod / f32 debug)

    # In-kernel cast: hidden under DMA/MXU slack, no wrapper-side HBM pass.
    past = past_ref[...].astype(cdt)             # (Bblk, L, E)
    curr = curr_ref[...].astype(cdt)             # (Bblk, E)
    mask = mask_ref[...]                         # (Bblk, L) int32, nonzero == padded key

    # Fused weights (pre-transposed to (in, out)); 1/sqrt(dh) folded into wq/bq.
    wq, wk, wv, wo = w_ref[0], w_ref[1], w_ref[2], w_ref[3]      # (E, E) each
    bq = b_ref[0:1, :]                           # (1, E) f32
    bk = b_ref[1:2, :]
    bv = b_ref[2:3, :]
    bo = b_ref[3:4, :]
    sel = sel_ref[...]                           # (E, H) exact 0/1, compute dtype
    sel_t = selt_ref[...]                        # (H, E) exact 0/1

    # --- fused projections (outer bias-free linear folded into MHA in-proj) ----
    q = jnp.dot(curr, wq, preferred_element_type=f32) + bq        # (Bblk, E) f32
    past2d = past.reshape(Bblk * L, E)                            # view (L % 8 == 0)
    k = jnp.dot(past2d, wk, preferred_element_type=f32) + bk      # (Bblk*L, E) f32
    v = jnp.dot(past2d, wv, preferred_element_type=f32) + bv      # (Bblk*L, E) f32
    k3 = k.reshape(Bblk, L, E)
    v3 = v.reshape(Bblk, L, E)

    # --- per-head scores via head-selector matmul (no per-head lane slicing) ----
    #   s[b, l, h] = sum_e q[b, e] * k[b, l, e] * [e in head h]
    qk = (q[:, None, :] * k3).reshape(Bblk * L, E)                # f32 elementwise
    s = jnp.dot(qk.astype(cdt), sel,
                preferred_element_type=f32).reshape(Bblk, L, H)

    # key_padding_mask: nonzero == ignore this key.
    s = jnp.where(mask[:, :, None] != 0, -1e30, s)                # (Bblk, L, H)

    # --- softmax with add_zero_attn folded analytically -------------------------
    # The extra zero-attn slot has score 0, value 0 and is never masked.
    m = jnp.maximum(jnp.max(s, axis=1, keepdims=True), 0.0)       # (Bblk, 1, H)
    p = jnp.exp(s - m)                                            # masked -> 0
    denom = jnp.sum(p, axis=1, keepdims=True) + jnp.exp(-m)       # + zero-attn slot
    p = p * pl.reciprocal(denom, approx=True)                     # (Bblk, L, H)

    # --- expand per-head weights back to E lanes and contract over L ------------
    p_e = jnp.dot(p.reshape(Bblk * L, H).astype(cdt), sel_t,
                  preferred_element_type=f32).reshape(Bblk, L, E)
    att = jnp.sum(p_e * v3, axis=1)                               # (Bblk, E) f32

    # --- MHA output projection ---------------------------------------------------
    out = jnp.dot(att.astype(cdt), wo, preferred_element_type=f32) + bo
    o_ref[...] = out.astype(o_ref.dtype)                          # lane-dense 2-D slab


def prepare_attention_params(params, num_heads, dtype=jnp.bfloat16):
    """One-time preprocessing (call at init, NOT per forward step).

    * Fuses the bias-free Q/K/V linears into the MHA in-projections:
          x @ WQ.T @ Wq_in.T == x @ (Wq_in @ WQ).T
    * Folds the 1/sqrt(dh) attention scale into wq and bq.
    * Builds the exact 0/1 head-selector matrices on the host.
    Returns (w_stack (4,E,E) dtype, b_stack (4,E) f32, sel (E,H), sel_t (H,E)).
    dtype=jnp.bfloat16 (default) runs all MXU matmuls in bf16.
    """
    E = params["wQ"].shape[0]
    dh = E // num_heads
    scale = 1.0 / math.sqrt(dh)
    wq = (params["wq_in"] @ params["wQ"]).T * scale
    wk = (params["wk_in"] @ params["wK"]).T
    wv = (params["wv_in"] @ params["wV"]).T
    wo = params["w_out"].T
    w_stack = jnp.stack([wq, wk, wv, wo], axis=0).astype(dtype)           # (4, E, E)
    b_stack = jnp.stack([params["bq"] * scale, params["bk"], params["bv"],
                         params["b_out"]], axis=0).astype(jnp.float32)    # (4, E)
    e_ids = jnp.arange(E) // dh
    h_ids = jnp.arange(num_heads)
    sel = (e_ids[:, None] == h_ids[None, :]).astype(dtype)                # (E, H)
    sel_t = (h_ids[:, None] == e_ids[None, :]).astype(dtype)              # (H, E)
    return w_stack, b_stack, sel, sel_t


def _vmem_bytes_estimate(block_b, L, E, H, w_itemsize):
    """Rough per-step VMEM footprint: double-buffered tiles + live intermediates."""
    f32 = 4
    tile = block_b * L * E
    b = 2 * tile * f32                         # past tile (double-buffered input)
    b += 2 * block_b * max(E, 128) * f32       # curr
    b += 2 * block_b * max(L, 128) * 4         # mask (int32, lane pad)
    b += 2 * block_b * max(E, 128) * f32       # out
    b += 2 * 4 * E * E * w_itemsize            # fused weights (constant-index)
    b += 2 * 4 * max(E, 128) * f32             # biases (lane pad)
    b += 4 * E * max(H, 128) * w_itemsize      # selectors (lane pad, 2 arrays x 2 bufs)
    b += tile * (6 * f32 + 2 * w_itemsize)     # k3/v3/qk/p_e f32 + bf16 staging
    return b


def _choose_block_b(B, L, E, H, w_itemsize, target_rows=512,
                    vmem_budget=48 * 1024 * 1024, min_grid=1):
    """Largest batch tile (divisor of B, == B or multiple of 8) with
    Bblk*L <= target_rows and VMEM estimate within budget. When achievable,
    keep B // Bblk >= min_grid (pass min_grid=2 on v7x: two TensorCores)."""
    cands = [d for d in range(1, B + 1)
             if B % d == 0 and (d == B or d % 8 == 0)]

    def ok(d, respect_grid):
        if respect_grid and B // d < min_grid:
            return False
        if d * L > target_rows:
            return False
        return _vmem_bytes_estimate(d, L, E, H, w_itemsize) <= vmem_budget

    best = None
    for d in cands:                      # ascending -> keep the largest passing
        if ok(d, True):
            best = d
    if best is None:
        for d in cands:
            if ok(d, False):
                best = d
    if best is None:
        best = min(cands)
    return best


def attention_block(past, curr, mask, w_stack, b_stack, sel, sel_t,
                    num_heads, block_b=None, target_rows=512, min_grid=1):
    """past: (B, L, E) f32; curr: (B, E) f32; mask: (B, L) bool; returns (B, E) f32."""
    B, L, E = past.shape
    H = num_heads
    assert E % H == 0

    # Keep the in-kernel reshapes layout-free: L must be a multiple of 8.
    if L % 8 != 0:
        pad = 8 - L % 8
        past = jnp.pad(past, ((0, 0), (0, pad), (0, 0)))
        mask = jnp.pad(mask, ((0, 0), (0, pad)), constant_values=True)
        L += pad

    curr = curr.reshape(B, E)            # no dtype cast here (done in-kernel)
    mask_i = mask.astype(jnp.int32)      # (B, L) lane-dense

    w_itemsize = jnp.dtype(w_stack.dtype).itemsize
    if block_b is None:
        block_b = _choose_block_b(B, L, E, H, w_itemsize,
                                  target_rows=target_rows, min_grid=min_grid)
    assert B % block_b == 0
    grid_b = B // block_b

    est = _vmem_bytes_estimate(block_b, L, E, H, w_itemsize)
    vmem_limit = int(min(100 * 1024 * 1024, max(32 * 1024 * 1024, 2 * est)))

    kernel = partial(_attention_kernel, L=L, E=E, H=H, Bblk=block_b)

    # TODO(synk): if L can grow large (>~1024), add a second ("arbitrary") grid
    # axis over L with online-softmax accumulators so the whole context does not
    # have to fit in one VMEM step.
    out = pl.pallas_call(
        kernel,
        out_shape=jax.ShapeDtypeStruct((B, E), jnp.float32),
        grid_spec=pltpu.PrefetchScalarGridSpec(
            num_scalar_prefetch=0,
            grid=(grid_b,),
            in_specs=[
                pl.BlockSpec((block_b, L, E), lambda b: (b, 0, 0)),   # past tile
                pl.BlockSpec((block_b, E), lambda b: (b, 0)),         # curr tile
                pl.BlockSpec((block_b, L), lambda b: (b, 0)),         # mask tile (2-D)
                # Constant index_map: weight/bias/selector blocks are DMA'd once
                # across the whole grid (block index never changes).
                # TODO(synk): pipeline_mode=pl.Buffered(1) would also single-buffer
                # these constant blocks and free VMEM at large E.
                pl.BlockSpec((4, E, E), lambda b: (0, 0, 0)),         # fused weights
                pl.BlockSpec((4, E), lambda b: (0, 0)),               # biases
                pl.BlockSpec((E, H), lambda b: (0, 0)),               # head selector
                pl.BlockSpec((H, E), lambda b: (0, 0)),               # head selector^T
            ],
            out_specs=pl.BlockSpec((block_b, E), lambda b: (b, 0)),
        ),
        compiler_params=pltpu.CompilerParams(
            dimension_semantics=("parallel",),
            vmem_limit_bytes=vmem_limit),
    )(past, curr, mask_i, w_stack, b_stack, sel, sel_t)
    return out


def attention_block_ref(past, curr, mask, params, num_heads):
    """Pure-JAX reference mirroring torch semantics (unfused, explicit zero-attn)."""
    B, L, E = past.shape
    dh = E // num_heads
    q = curr @ params["wQ"].T @ params["wq_in"].T + params["bq"]          # (B, E)
    k = past @ params["wK"].T @ params["wk_in"].T + params["bk"]          # (B, L, E)
    v = past @ params["wV"].T @ params["wv_in"].T + params["bv"]
    k = jnp.concatenate([k, jnp.zeros((B, 1, E), jnp.float32)], axis=1)
    v = jnp.concatenate([v, jnp.zeros((B, 1, E), jnp.float32)], axis=1)
    m = jnp.concatenate([mask, jnp.zeros((B, 1), bool)], axis=1)          # (B, L+1)
    qh = q.reshape(B, 1, num_heads, dh).transpose(0, 2, 1, 3)
    kh = k.reshape(B, L + 1, num_heads, dh).transpose(0, 2, 1, 3)
    vh = v.reshape(B, L + 1, num_heads, dh).transpose(0, 2, 1, 3)
    s = jnp.einsum("bhqd,bhkd->bhqk", qh, kh) / math.sqrt(dh)
    s = jnp.where(m[:, None, None, :], -1e30, s)
    p = jax.nn.softmax(s, axis=-1)
    o = jnp.einsum("bhqk,bhkd->bhqd", p, vh)
    o = o.transpose(0, 2, 1, 3).reshape(B, E)
    return o @ params["w_out"].T + params["b_out"]


if __name__ == "__main__":
    B, L, E, H = 2, 8, 32, 4
    key = jax.random.PRNGKey(0)
    ks = jax.random.split(key, 16)

    def uinit(k, shape, fan_in):
        bound = 1.0 / math.sqrt(fan_in)
        return jax.random.uniform(k, shape, jnp.float32, -bound, bound)

    params = {
        "wQ": uinit(ks[0], (E, E), E),
        "wK": uinit(ks[1], (E, E), E),
        "wV": uinit(ks[2], (E, E), E),
        "wq_in": uinit(ks[3], (E, E), E),
        "wk_in": uinit(ks[4], (E, E), E),
        "wv_in": uinit(ks[5], (E, E), E),
        "w_out": uinit(ks[6], (E, E), E),
        "bq": uinit(ks[7], (E,), E),
        "bk": uinit(ks[8], (E,), E),
        "bv": uinit(ks[9], (E,), E),
        "b_out": uinit(ks[10], (E,), E),
    }

    past = jax.random.normal(ks[11], (B, L, E), jnp.float32)
    curr = jax.random.normal(ks[12], (B, E), jnp.float32)
    mask = jax.random.bernoulli(ks[13], 0.3, (B, L))

    ref = attention_block_ref(past, curr, mask, params, H)

    # f32 debug path (exact up to fusion reordering + approx reciprocal).
    w_f32, b_f32, sel_f32, selt_f32 = prepare_attention_params(
        params, H, dtype=jnp.float32)                              # once, at init
    out = attention_block(past, curr, mask, w_f32, b_f32, sel_f32, selt_f32, H)
    out = jax.block_until_ready(out)
    assert out.shape == (B, E)
    assert jnp.all(jnp.isfinite(out))
    assert jnp.allclose(out, ref, rtol=5e-3, atol=5e-3), \
        f"f32 max abs err {float(jnp.max(jnp.abs(out - ref)))}"

    # bf16 production path (default): all MXU matmuls in bf16, softmax/bias in f32.
    w_bf, b_bf, sel_bf, selt_bf = prepare_attention_params(params, H)
    out_bf = attention_block(past, curr, mask, w_bf, b_bf, sel_bf, selt_bf, H)
    out_bf = jax.block_until_ready(out_bf)
    assert float(jnp.max(jnp.abs(out_bf - ref))) < 0.1

    print("KERNEL_OK")
</pallas_src>

<mosaic_0001>
module attributes {stable_mosaic.version = 11 : i64} {
  func.func @_attention_kernel(%arg0: i32, %arg1: memref<2x8x32xf32, #tpu.memory_space<vmem>>, %arg2: memref<2x32xf32, #tpu.memory_space<vmem>>, %arg3: memref<2x8xi32, #tpu.memory_space<vmem>>, %arg4: memref<4x32x32xf32, #tpu.memory_space<vmem>>, %arg5: memref<4x32xf32, #tpu.memory_space<vmem>>, %arg6: memref<32x4xf32, #tpu.memory_space<vmem>>, %arg7: memref<4x32xf32, #tpu.memory_space<vmem>>, %arg8: memref<2x32xf32, #tpu.memory_space<vmem>>) attributes {dimension_semantics = [#tpu.dimension_semantics<parallel>], iteration_bounds = array<i64: 1>, scalar_prefetch = 0 : i64, scratch_operands = 0 : i64, tpu.core_type = #tpu.core_type<tc>, window_params = [{transform_indices = @transform_0, window_bounds = array<i64: 2, 8, 32>}, {transform_indices = @transform_1, window_bounds = array<i64: 2, 32>}, {transform_indices = @transform_2, window_bounds = array<i64: 2, 8>}, {pipeline_mode = #tpu.pipeline_mode<synchronous>, transform_indices = @transform_3, window_bounds = array<i64: 4, 32, 32>}, {pipeline_mode = #tpu.pipeline_mode<synchronous>, transform_indices = @transform_4, window_bounds = array<i64: 4, 32>}, {pipeline_mode = #tpu.pipeline_mode<synchronous>, transform_indices = @transform_5, window_bounds = array<i64: 32, 4>}, {pipeline_mode = #tpu.pipeline_mode<synchronous>, transform_indices = @transform_6, window_bounds = array<i64: 4, 32>}, {transform_indices = @transform_7, window_bounds = array<i64: 2, 32>}]} {
    %c0 = arith.constant 0 : index
    %c0_0 = arith.constant 0 : index
    %c0_1 = arith.constant 0 : index
    %0 = vector.load %arg1[%c0, %c0_0, %c0_1] : memref<2x8x32xf32, #tpu.memory_space<vmem>>, vector<2x8x32xf32>
    %c0_2 = arith.constant 0 : index
    %c0_3 = arith.constant 0 : index
    %1 = vector.load %arg2[%c0_2, %c0_3] : memref<2x32xf32, #tpu.memory_space<vmem>>, vector<2x32xf32>
    %c0_4 = arith.constant 0 : index
    %c0_5 = arith.constant 0 : index
    %2 = vector.load %arg3[%c0_4, %c0_5] : memref<2x8xi32, #tpu.memory_space<vmem>>, vector<2x8xi32>
    %c0_6 = arith.constant 0 : index
    %c0_7 = arith.constant 0 : index
    %c0_8 = arith.constant 0 : index
    %3 = vector.load %arg4[%c0_6, %c0_7, %c0_8] : memref<4x32x32xf32, #tpu.memory_space<vmem>>, vector<1x32x32xf32>
    %4 = vector.shape_cast %3 : vector<1x32x32xf32> to vector<32x32xf32>
    %c1 = arith.constant 1 : index
    %c0_9 = arith.constant 0 : index
    %c0_10 = arith.constant 0 : index
    %5 = vector.load %arg4[%c1, %c0_9, %c0_10] : memref<4x32x32xf32, #tpu.memory_space<vmem>>, vector<1x32x32xf32>
    %6 = vector.shape_cast %5 : vector<1x32x32xf32> to vector<32x32xf32>
    %c2 = arith.constant 2 : index
    %c0_11 = arith.constant 0 : index
    %c0_12 = arith.constant 0 : index
    %7 = vector.load %arg4[%c2, %c0_11, %c0_12] : memref<4x32x32xf32, #tpu.memory_space<vmem>>, vector<1x32x32xf32>
    %8 = vector.shape_cast %7 : vector<1x32x32xf32> to vector<32x32xf32>
    %c3 = arith.constant 3 : index
    %c0_13 = arith.constant 0 : index
    %c0_14 = arith.constant 0 : index
    %9 = vector.load %arg4[%c3, %c0_13, %c0_14] : memref<4x32x32xf32, #tpu.memory_space<vmem>>, vector<1x32x32xf32>
    %10 = vector.shape_cast %9 : vector<1x32x32xf32> to vector<32x32xf32>
    %c0_15 = arith.constant 0 : index
    %c0_16 = arith.constant 0 : index
    %11 = vector.load %arg5[%c0_15, %c0_16] : memref<4x32xf32, #tpu.memory_space<vmem>>, vector<1x32xf32>
    %c1_17 = arith.constant 1 : index
    %c0_18 = arith.constant 0 : index
    %12 = vector.load %arg5[%c1_17, %c0_18] : memref<4x32xf32, #tpu.memory_space<vmem>>, vector<1x32xf32>
    %c2_19 = arith.constant 2 : index
    %c0_20 = arith.constant 0 : index
    %13 = vector.load %arg5[%c2_19, %c0_20] : memref<4x32xf32, #tpu.memory_space<vmem>>, vector<1x32xf32>
    %c3_21 = arith.constant 3 : index
    %c0_22 = arith.constant 0 : index
    %14 = vector.load %arg5[%c3_21, %c0_22] : memref<4x32xf32, #tpu.memory_space<vmem>>, vector<1x32xf32>
    %c0_23 = arith.constant 0 : index
    %c0_24 = arith.constant 0 : index
    %15 = vector.load %arg6[%c0_23, %c0_24] : memref<32x4xf32, #tpu.memory_space<vmem>>, vector<32x4xf32>
    %c0_25 = arith.constant 0 : index
    %c0_26 = arith.constant 0 : index
    %16 = vector.load %arg7[%c0_25, %c0_26] : memref<4x32xf32, #tpu.memory_space<vmem>>, vector<4x32xf32>
    %cst = arith.constant dense<0.000000e+00> : vector<2x32xf32>
    %17 = tpu.matmul %1, %4, %cst {dimension_numbers = #tpu.dot_dimension_numbers<[1], [0], [0], [1], [0, 0, 1, 1], [], []>} : vector<2x32xf32>, vector<32x32xf32>, vector<2x32xf32> -> vector<2x32xf32>
    %18 = vector.broadcast %11 : vector<1x32xf32> to vector<2x32xf32>
    %19 = arith.addf %17, %18 : vector<2x32xf32>
    %20 = vector.shape_cast %0 : vector<2x8x32xf32> to vector<16x32xf32>
    %cst_27 = arith.constant dense<0.000000e+00> : vector<16x32xf32>
    %21 = tpu.matmul %20, %6, %cst_27 {dimension_numbers = #tpu.dot_dimension_numbers<[1], [0], [0], [1], [0, 0, 1, 1], [], []>} : vector<16x32xf32>, vector<32x32xf32>, vector<16x32xf32> -> vector<16x32xf32>
    %22 = vector.broadcast %12 : vector<1x32xf32> to vector<16x32xf32>
    %23 = arith.addf %21, %22 : vector<16x32xf32>
    %cst_28 = arith.constant dense<0.000000e+00> : vector<16x32xf32>
    %24 = tpu.matmul %20, %8, %cst_28 {dimension_numbers = #tpu.dot_dimension_numbers<[1], [0], [0], [1], [0, 0, 1, 1], [], []>} : vector<16x32xf32>, vector<32x32xf32>, vector<16x32xf32> -> vector<16x32xf32>
    %25 = vector.broadcast %13 : vector<1x32xf32> to vector<16x32xf32>
    %26 = arith.addf %24, %25 : vector<16x32xf32>
    %27 = vector.shape_cast %23 : vector<16x32xf32> to vector<2x8x32xf32>
    %28 = vector.shape_cast %26 : vector<16x32xf32> to vector<2x8x32xf32>
    %29 = vector.shape_cast %19 : vector<2x32xf32> to vector<2x1x32xf32>
    %30 = vector.broadcast %29 : vector<2x1x32xf32> to vector<2x8x32xf32>
    %31 = arith.mulf %30, %27 : vector<2x8x32xf32>
    %32 = vector.shape_cast %31 : vector<2x8x32xf32> to vector<16x32xf32>
    %cst_29 = arith.constant dense<0.000000e+00> : vector<16x4xf32>
    %33 = tpu.matmul %32, %15, %cst_29 {dimension_numbers = #tpu.dot_dimension_numbers<[1], [0], [0], [1], [0, 0, 1, 1], [], []>} : vector<16x32xf32>, vector<32x4xf32>, vector<16x4xf32> -> vector<16x4xf32>
    %34 = vector.shape_cast %33 : vector<16x4xf32> to vector<2x8x4xf32>
    %35 = vector.shape_cast %2 : vector<2x8xi32> to vector<2x8x1xi32>
    %c0_i32 = arith.constant 0 : i32
    %36 = vector.broadcast %c0_i32 : i32 to vector<2x8x1xi32>
    %37 = arith.cmpi ne, %35, %36 : vector<2x8x1xi32>
    %cst_30 = arith.constant -1.000000e+30 : f32
    %38 = vector.shape_cast %37 : vector<2x8x1xi1> to vector<2x8x1xi1>
    %39 = vector.broadcast %38 : vector<2x8x1xi1> to vector<2x8x4xi1>
    %40 = vector.broadcast %cst_30 : f32 to vector<2x8x4xf32>
    %41 = arith.select %39, %40, %34 : vector<2x8x4xi1>, vector<2x8x4xf32>
    %cst_31 = arith.constant dense<0xFF800000> : vector<2x4xf32>
    %42 = vector.multi_reduction <maximumf>, %41, %cst_31 [1] : vector<2x8x4xf32> to vector<2x4xf32>
    %43 = vector.shape_cast %42 : vector<2x4xf32> to vector<2x1x4xf32>
    %cst_32 = arith.constant 0.000000e+00 : f32
    %44 = vector.broadcast %cst_32 : f32 to vector<2x1x4xf32>
    %45 = arith.maximumf %43, %44 : vector<2x1x4xf32>
    %46 = vector.broadcast %45 : vector<2x1x4xf32> to vector<2x8x4xf32>
    %47 = arith.subf %41, %46 : vector<2x8x4xf32>
    %48 = math.exp %47 : vector<2x8x4xf32>
    %cst_33 = arith.constant dense<0.000000e+00> : vector<2x4xf32>
    %49 = vector.multi_reduction <add>, %48, %cst_33 [1] : vector<2x8x4xf32> to vector<2x4xf32>
    %50 = vector.shape_cast %49 : vector<2x4xf32> to vector<2x1x4xf32>
    %cst_34 = arith.constant 0.000000e+00 : f32
    %51 = vector.broadcast %cst_34 : f32 to vector<2x1x4xf32>
    %52 = arith.subf %51, %45 : vector<2x1x4xf32>
    %53 = math.exp %52 : vector<2x1x4xf32>
    %54 = arith.addf %50, %53 : vector<2x1x4xf32>
    %55 = tpu.reciprocal %54 {approx = true} : vector<2x1x4xf32> -> vector<2x1x4xf32>
    %56 = vector.broadcast %55 : vector<2x1x4xf32> to vector<2x8x4xf32>
    %57 = arith.mulf %48, %56 : vector<2x8x4xf32>
    %58 = vector.shape_cast %57 : vector<2x8x4xf32> to vector<16x4xf32>
    %cst_35 = arith.constant dense<0.000000e+00> : vector<16x32xf32>
    %59 = tpu.matmul %58, %16, %cst_35 {dimension_numbers = #tpu.dot_dimension_numbers<[1], [0], [0], [1], [0, 0, 1, 1], [], []>} : vector<16x4xf32>, vector<4x32xf32>, vector<16x32xf32> -> vector<16x32xf32>
    %60 = vector.shape_cast %59 : vector<16x32xf32> to vector<2x8x32xf32>
    %61 = arith.mulf %60, %28 : vector<2x8x32xf32>
    %cst_36 = arith.constant dense<0.000000e+00> : vector<2x32xf32>
    %62 = vector.multi_reduction <add>, %61, %cst_36 [1] : vector<2x8x32xf32> to vector<2x32xf32>
    %cst_37 = arith.constant dense<0.000000e+00> : vector<2x32xf32>
    %63 = tpu.matmul %62, %10, %cst_37 {dimension_numbers = #tpu.dot_dimension_numbers<[1], [0], [0], [1], [0, 0, 1, 1], [], []>} : vector<2x32xf32>, vector<32x32xf32>, vector<2x32xf32> -> vector<2x32xf32>
    %64 = vector.broadcast %14 : vector<1x32xf32> to vector<2x32xf32>
    %65 = arith.addf %63, %64 : vector<2x32xf32>
    %c0_38 = arith.constant 0 : index
    %c0_39 = arith.constant 0 : index
    %66 = vector.load %arg8[%c0_38, %c0_39] : memref<2x32xf32, #tpu.memory_space<vmem>>, vector<2x32xf32>
    tpu.vector_store %arg8[%c0_38, %c0_39], %65 {strides = array<i32>} : memref<2x32xf32, #tpu.memory_space<vmem>>, vector<2x32xf32>,
    return
  }
  func.func @transform_0(%arg0: i32) -> (i32, i32, i32) {
    %c0_i32 = arith.constant 0 : i32
    %c0_i32_0 = arith.constant 0 : i32
    %c0_i32_1 = arith.constant 0 : i32
    return %arg0, %c0_i32, %c0_i32_0 : i32, i32, i32
  }
  func.func @transform_1(%arg0: i32) -> (i32, i32) {
    %c0_i32 = arith.constant 0 : i32
    %c0_i32_0 = arith.constant 0 : i32
    return %arg0, %c0_i32 : i32, i32
  }
  func.func @transform_2(%arg0: i32) -> (i32, i32) {
    %c0_i32 = arith.constant 0 : i32
    %c0_i32_0 = arith.constant 0 : i32
    return %arg0, %c0_i32 : i32, i32
  }
  func.func @transform_3(%arg0: i32) -> (i32, i32, i32) {
    %c0_i32 = arith.constant 0 : i32
    %c0_i32_0 = arith.constant 0 : i32
    %c0_i32_1 = arith.constant 0 : i32
    %c0_i32_2 = arith.constant 0 : i32
    return %c0_i32, %c0_i32_0, %c0_i32_1 : i32, i32, i32
  }
  func.func @transform_4(%arg0: i32) -> (i32, i32) {
    %c0_i32 = arith.constant 0 : i32
    %c0_i32_0 = arith.constant 0 : i32
    %c0_i32_1 = arith.constant 0 : i32
    return %c0_i32, %c0_i32_0 : i32, i32
  }
  func.func @transform_5(%arg0: i32) -> (i32, i32) {
    %c0_i32 = arith.constant 0 : i32
    %c0_i32_0 = arith.constant 0 : i32
    %c0_i32_1 = arith.constant 0 : i32
    return %c0_i32, %c0_i32_0 : i32, i32
  }
  func.func @transform_6(%arg0: i32) -> (i32, i32) {
    %c0_i32 = arith.constant 0 : i32
    %c0_i32_0 = arith.constant 0 : i32
    %c0_i32_1 = arith.constant 0 : i32
    return %c0_i32, %c0_i32_0 : i32, i32
  }
  func.func @transform_7(%arg0: i32) -> (i32, i32) {
    %c0_i32 = arith.constant 0 : i32
    %c0_i32_0 = arith.constant 0 : i32
    return %arg0, %c0_i32 : i32, i32
  }
}

</mosaic_0001>

<llo_original>
// kernel: tpu_custom_call.1
$region0: #{tpu_custom_call.1}
  #allocation0 [shape = 'u32[]', space=smem, size = 0x4, offset = 0x4, fixed_abs, tag = 'smem constant byte address 0x4 - core index']
  #allocation1 [shape = 'u32[144,128]{1,0:T(1,128)}', space=vmem, size = 0x12000, scoped, tag = 'internal scratch']
  %s0 = inlined_call_operand.vmem [shape: f32[2,8,32], index: 0, kind: input, shape index: {}]
  %s1 = inlined_call_operand.vmem [shape: f32[2,32], index: 1, kind: input, shape index: {}]
  %s2 = inlined_call_operand.vmem [shape: s32[2,8], index: 2, kind: input, shape index: {}]
  %s3 = inlined_call_operand.hbm [shape: f32[4,32,32], index: 3, kind: input, shape index: {}]
  %s4 = inlined_call_operand.vmem [shape: f32[4,32], index: 4, kind: input, shape index: {}]
  %s5 = inlined_call_operand.vmem [shape: f32[32,4], index: 5, kind: input, shape index: {}]
  %s6 = inlined_call_operand.vmem [shape: f32[4,32], index: 6, kind: input, shape index: {}]
  %s7 = inlined_call_operand.hbm [shape: f32[2,32], index: 7, kind: output, shape index: {}]
  %s8 = sld [smem:[#allocation0]]
  $region42: #{tpu_custom_call.1} parent=0
    _
  %s10 = ssub.s32 1, %s8
  %s11 = scalar_select 0, %s10, %s8
  $region1: #{tpu_custom_call.1} parent=0
    #allocation2 [shape = 'u8[65536]{0}', space=vmem, size = 0x10000, scoped, tag = 'input window, operand 3, single buffered']
    #allocation3 [shape = 's32[1]{0}', space=sflag, size = 0x4, scoped, tag = 'scoped memory for tpu_custom_call.1']
    #allocation4 [shape = 's32[1]{0}', space=sflag, size = 0x4, scoped, tag = 'scoped memory for tpu_custom_call.1']
    #allocation5 [shape = 'u8[1024]{0}', space=vmem, size = 0x400, scoped, tag = 'output window, operand 0, single buffered']
    %12 = vsyncpa [#allocation3], 0
    %13 = vsyncpa [#allocation4], 0
    // Predicated region
    $region2: #{tpu_custom_call.1} parent=1 // pred_check
      _
    $region3: #{tpu_custom_call.1} parent=1 // pred_check_branch
      %15 = sbr.rel (0) target = $region5
    $region4: #{tpu_custom_call.1} parent=1 // pred_region
      _
    $region5: #{tpu_custom_call.1} parent=1 // pred_fallthru
      _
    // Predicated region
    $region6: #{tpu_custom_call.1} parent=1 // pred_check
      _
    $region7: #{tpu_custom_call.1} parent=1 // pred_check_branch
      %17 = sbr.rel (0) target = $region9
    $region8: #{tpu_custom_call.1} parent=1 // pred_region
      _
    $region9: #{tpu_custom_call.1} parent=1 // pred_fallthru
      _
    // Predicated region
    $region10: #{tpu_custom_call.1} parent=1 // pred_check
      _
    $region11: #{tpu_custom_call.1} parent=1 // pred_check_branch
      %19 = sbr.rel (0) target = $region13
    $region12: #{tpu_custom_call.1} parent=1 // pred_region
      _
    $region13: #{tpu_custom_call.1} parent=1 // pred_fallthru
      _
    // Predicated region
    $region14: #{tpu_custom_call.1} parent=1 // pred_check
      _
    $region15: #{tpu_custom_call.1} parent=1 // pred_check_branch
      %21 = sbr.rel (0) target = $region17
    $region16: #{tpu_custom_call.1} parent=1 // pred_region
      %s23 = ssub.s32 2048, 2048
      %24 = vsyncadd [#allocation3], %s23
      %s25 = sshll.u32 [#allocation2], 4
      %s26 = int_to_ptr.vmem [resolvable:$true] %s25
      %31 = dma.hbm_to_vmem [thread:$0]  %s3, 2048, %s26, [#allocation3], 128, 128, 8
    $region17: #{tpu_custom_call.1} parent=1 // pred_fallthru
      _
    // Predicated region
    $region18: #{tpu_custom_call.1} parent=1 // pred_check
      _
    $region19: #{tpu_custom_call.1} parent=1 // pred_check_branch
      %33 = sbr.rel (0) target = $region21
    $region20: #{tpu_custom_call.1} parent=1 // pred_region
      _
    $region21: #{tpu_custom_call.1} parent=1 // pred_fallthru
      _
    // Predicated region
    $region22: #{tpu_custom_call.1} parent=1 // pred_check
      _
    $region23: #{tpu_custom_call.1} parent=1 // pred_check_branch
      %35 = sbr.rel (0) target = $region25
    $region24: #{tpu_custom_call.1} parent=1 // pred_region
      _
    $region25: #{tpu_custom_call.1} parent=1 // pred_fallthru
      _
    // Predicated region
    $region26: #{tpu_custom_call.1} parent=1 // pred_check
      _
    $region27: #{tpu_custom_call.1} parent=1 // pred_check_branch
      %37 = sbr.rel (0) target = $region29
    $region28: #{tpu_custom_call.1} parent=1 // pred_region
      _
    $region29: #{tpu_custom_call.1} parent=1 // pred_fallthru
      _
    // Predicated region
    $region30: #{tpu_custom_call.1} parent=1 // pred_check
      _
    $region31: #{tpu_custom_call.1} parent=1 // pred_check_branch
      %39 = sbr.rel (0) target = $region33
    $region32: #{tpu_custom_call.1} parent=1 // pred_region
      %40 = dma.done [#allocation3], 2048
    $region33: #{tpu_custom_call.1} parent=1 // pred_fallthru
      _
    %v41 = vld [vmem:[%s0] sm:$0xff]
    %v42 = vld [vmem:[%s0 + $0x8] sm:$0xff]
    %v43 = vld [vmem:[%s1] sm:$0x3]
    %v44 = vld [vmem:[%s2] sm:$0x3]
    %v45 = vld [vmem:[#allocation2] sm:$0xff]
    %v46 = vld [vmem:[#allocation2 + $0x8] sm:$0xff]
    %v47 = vld [vmem:[#allocation2 + $0x10] sm:$0xff]
    %v48 = vld [vmem:[#allocation2 + $0x18] sm:$0xff]
    %s49 = scalar_lea.vmem [#allocation2], 32
    %v50 = vld [vmem:[%s49] sm:$0xff]
    %v51 = vld [vmem:[%s49 + $0x8] sm:$0xff]
    %v52 = vld [vmem:[%s49 + $0x10] sm:$0xff]
    %v53 = vld [vmem:[%s49 + $0x18] sm:$0xff]
    %s54 = scalar_lea.vmem [#allocation2], 64
    %v55 = vld [vmem:[%s54] sm:$0xff]
    %v56 = vld [vmem:[%s54 + $0x8] sm:$0xff]
    %v57 = vld [vmem:[%s54 + $0x10] sm:$0xff]
    %v58 = vld [vmem:[%s54 + $0x18] sm:$0xff]
    %s59 = scalar_lea.vmem [#allocation2], 96
    %v60 = vld [vmem:[%s59] sm:$0xff]
    %v61 = vld [vmem:[%s59 + $0x8] sm:$0xff]
    %v62 = vld [vmem:[%s59 + $0x10] sm:$0xff]
    %v63 = vld [vmem:[%s59 + $0x18] sm:$0xff]
    %v64 = vld [vmem:[%s4] sm:$0x1]
    %v65 = vld [vmem:[%s4 + $0x1] sm:$0x1]
    %v66 = vld [vmem:[%s4 + $0x2] sm:$0x1]
    %v67 = vld [vmem:[%s4 + $0x3] sm:$0x1]
    %v68 = vld [vmem:[%s5] sm:$0xff]
    %v69 = vld [vmem:[%s5 + $0x8] sm:$0xff]
    %v70 = vld [vmem:[%s5 + $0x10] sm:$0xff]
    %v71 = vld [vmem:[%s5 + $0x18] sm:$0xff]
    %v72 = vld [vmem:[%s6] sm:$0xf]
    %v73 = vlaneseq
    %v74 = vshrl.u32 %v73, 7
    %v75 = vsub.s32 0, %v74
    %v76 = vrot.slane %v64, %v75
    %vm77 = vcmask 261120
    %v79 = vsel %vm77, %v43, 0
    %81 = vmatprep.subr.mxu0 0.0
    %82 = vmatpush1.msra.mxu0 %v45
    %83 = vmatprep.subr.mxu0 0.0
    %84 = vmatpush1.msra.mxu0 %v46
    %85 = vmatprep.subr.mxu0 0.0
    %86 = vmatpush1.msra.mxu0 %v47
    %87 = vmatprep.subr.mxu0 0.0
    %88 = vmatpush1.msra.mxu0 %v48
    %89 = vmatprep.subr.mxu0 0.0
    %90 = vmatpush1.msra.mxu0 0.0
    %91 = vmatprep.subr.mxu0 0.0
    %92 = vmatpush1.msra.mxu0 0.0
    %93 = vmatprep.subr.mxu0 0.0
    %94 = vmatpush1.msra.mxu0 0.0
    %95 = vmatprep.subr.mxu0 0.0
    %96 = vmatpush1.msra.mxu0 0.0
    %97 = vmatprep.subr.mxu0 0.0
    %98 = vmatpush1.msra.mxu0 0.0
    %99 = vmatprep.subr.mxu0 0.0
    %100 = vmatpush1.msra.mxu0 0.0
    %101 = vmatprep.subr.mxu0 0.0
    %102 = vmatpush1.msra.mxu0 0.0
    %103 = vmatprep.subr.mxu0 0.0
    %104 = vmatpush1.msra.mxu0 0.0
    %105 = vmatprep.subr.mxu0 0.0
    %106 = vmatpush1.msra.mxu0 0.0
    %107 = vmatprep.subr.mxu0 0.0
    %108 = vmatpush1.msra.mxu0 0.0
    %109 = vmatprep.subr.mxu0 0.0
    %110 = vmatpush1.msra.mxu0 0.0
    %111 = vmatprep.subr.mxu0 0.0
    %112 = vmatpush1.msra.mxu0 0.0
    %113 = vmatprep.subr.mxu0 0.0
    %114 = vmatpush1.msra.mxu0 0.0
    %115 = vmatprep.subr.mxu0 0.0
    %116 = vmatpush1.msra.mxu0 0.0
    %117 = vmatprep.subr.mxu0 0.0
    %118 = vmatpush1.msra.mxu0 0.0
    %119 = vmatprep.subr.mxu0 0.0
    %120 = vmatpush1.msra.mxu0 0.0
    %121 = vmatprep.subr.mxu0 0.0
    %122 = vmatpush1.msra.mxu0 0.0
    %123 = vmatprep.subr.mxu0 0.0
    %124 = vmatpush1.msra.mxu0 0.0
    %125 = vmatprep.subr.mxu0 0.0
    %126 = vmatpush1.msra.mxu0 0.0
    %127 = vmatprep.subr.mxu0 0.0
    %128 = vmatpush1.msra.mxu0 0.0
    %129 = vmatprep.subr.mxu0 0.0
    %130 = vmatpush1.msra.mxu0 0.0
    %131 = vmatprep.subr.mxu0 0.0
    %132 = vmatpush1.msra.mxu0 0.0
    %133 = vmatprep.subr.mxu0 0.0
    %134 = vmatpush1.msra.mxu0 0.0
    %135 = vmatprep.subr.mxu0 0.0
    %136 = vmatpush1.msra.mxu0 0.0
    %137 = vmatprep.subr.mxu0 0.0
    %138 = vmatpush1.msra.mxu0 0.0
    %139 = vmatprep.subr.mxu0 0.0
    %140 = vmatpush1.msra.mxu0 0.0
    %141 = vmatprep.subr.mxu0 0.0
    %142 = vmatpush1.msra.mxu0 0.0
    %143 = vmatprep.subr.mxu0 0.0
    %144 = vmatpush1.msra.mxu0 0.0
    %145 = vmatprep.mubr.f32.mxu0 0.0
    %146 = vmatmul.mubr.f32.gmra.mrb[0].mxu0 %v79
    %v147 = vpop.f32.mrb[0].mxu0
    %v148 = vadd.f32 %v76, %v147
    %v149 = vpop.f32.mrb[0].mxu0
    %150 = vdwg.mxu0
    %v151 = vlaneseq
    %v152 = vshrl.u32 %v151, 7
    %v153 = vsub.s32 0, %v152
    %v154 = vrot.slane %v65, %v153
    %v156 = vsel %vm77, %v41, 0
    %v159 = vsel %vm77, %v42, 0
    %161 = vmatprep.subr.mxu0 0.0
    %162 = vmatpush1.msra.mxu0 %v50
    %163 = vmatprep.subr.mxu0 0.0
    %164 = vmatpush1.msra.mxu0 %v51
    %165 = vmatprep.subr.mxu0 0.0
    %166 = vmatpush1.msra.mxu0 %v52
    %167 = vmatprep.subr.mxu0 0.0
    %168 = vmatpush1.msra.mxu0 %v53
    %169 = vmatprep.subr.mxu0 0.0
    %170 = vmatpush1.msra.mxu0 0.0
    %171 = vmatprep.subr.mxu0 0.0
    %172 = vmatpush1.msra.mxu0 0.0
    %173 = vmatprep.subr.mxu0 0.0
    %174 = vmatpush1.msra.mxu0 0.0
    %175 = vmatprep.subr.mxu0 0.0
    %176 = vmatpush1.msra.mxu0 0.0
    %177 = vmatprep.subr.mxu0 0.0
    %178 = vmatpush1.msra.mxu0 0.0
    %179 = vmatprep.subr.mxu0 0.0
    %180 = vmatpush1.msra.mxu0 0.0
    %181 = vmatprep.subr.mxu0 0.0
    %182 = vmatpush1.msra.mxu0 0.0
    %183 = vmatprep.subr.mxu0 0.0
    %184 = vmatpush1.msra.mxu0 0.0
    %185 = vmatprep.subr.mxu0 0.0
    %186 = vmatpush1.msra.mxu0 0.0
    %187 = vmatprep.subr.mxu0 0.0
    %188 = vmatpush1.msra.mxu0 0.0
    %189 = vmatprep.subr.mxu0 0.0
    %190 = vmatpush1.msra.mxu0 0.0
    %191 = vmatprep.subr.mxu0 0.0
    %192 = vmatpush1.msra.mxu0 0.0
    %193 = vmatprep.subr.mxu0 0.0
    %194 = vmatpush1.msra.mxu0 0.0
    %195 = vmatprep.subr.mxu0 0.0
    %196 = vmatpush1.msra.mxu0 0.0
    %197 = vmatprep.subr.mxu0 0.0
    %198 = vmatpush1.msra.mxu0 0.0
    %199 = vmatprep.subr.mxu0 0.0
    %200 = vmatpush1.msra.mxu0 0.0
    %201 = vmatprep.subr.mxu0 0.0
    %202 = vmatpush1.msra.mxu0 0.0
    %203 = vmatprep.subr.mxu0 0.0
    %204 = vmatpush1.msra.mxu0 0.0
    %205 = vmatprep.subr.mxu0 0.0
    %206 = vmatpush1.msra.mxu0 0.0
    %207 = vmatprep.subr.mxu0 0.0
    %208 = vmatpush1.msra.mxu0 0.0
    %209 = vmatprep.subr.mxu0 0.0
    %210 = vmatpush1.msra.mxu0 0.0
    %211 = vmatprep.subr.mxu0 0.0
    %212 = vmatpush1.msra.mxu0 0.0
    %213 = vmatprep.subr.mxu0 0.0
    %214 = vmatpush1.msra.mxu0 0.0
    %215 = vmatprep.subr.mxu0 0.0
    %216 = vmatpush1.msra.mxu0 0.0
    %217 = vmatprep.subr.mxu0 0.0
    %218 = vmatpush1.msra.mxu0 0.0
    %219 = vmatprep.subr.mxu0 0.0
    %220 = vmatpush1.msra.mxu0 0.0
    %221 = vmatprep.subr.mxu0 0.0
    %222 = vmatpush1.msra.mxu0 0.0
    %223 = vmatprep.subr.mxu0 0.0
    %224 = vmatpush1.msra.mxu0 0.0
    %225 = vmatprep.mubr.f32.mxu0 0.0
    %226 = vmatmul.mubr.f32.gmra.mrb[0].mxu0 %v156
    %v227 = vpop.f32.mrb[0].mxu0
    %v228 = vadd.f32 %v154, %v227
    %v229 = vpop.f32.mrb[0].mxu0
    %230 = vmatprep.mubr.f32.mxu0 0.0
    %231 = vmatmul.mubr.f32.gmra.mrb[0].mxu0 %v159
    %v232 = vpop.f32.mrb[0].mxu0
    %v233 = vadd.f32 %v154, %v232
    %v234 = vpop.f32.mrb[0].mxu0
    %235 = vdwg.mxu0
    %v236 = vlaneseq
    %v237 = vshrl.u32 %v236, 7
    %v238 = vsub.s32 0, %v237
    %v239 = vrot.slane %v66, %v238
    %240 = vmatprep.subr.mxu0 0.0
    %241 = vmatpush1.msra.mxu0 %v55
    %242 = vmatprep.subr.mxu0 0.0
    %243 = vmatpush1.msra.mxu0 %v56
    %244 = vmatprep.subr.mxu0 0.0
    %245 = vmatpush1.msra.mxu0 %v57
    %246 = vmatprep.subr.mxu0 0.0
    %247 = vmatpush1.msra.mxu0 %v58
    %248 = vmatprep.subr.mxu0 0.0
    %249 = vmatpush1.msra.mxu0 0.0
    %250 = vmatprep.subr.mxu0 0.0
    %251 = vmatpush1.msra.mxu0 0.0
    %252 = vmatprep.subr.mxu0 0.0
    %253 = vmatpush1.msra.mxu0 0.0
    %254 = vmatprep.subr.mxu0 0.0
    %255 = vmatpush1.msra.mxu0 0.0
    %256 = vmatprep.subr.mxu0 0.0
    %257 = vmatpush1.msra.mxu0 0.0
    %258 = vmatprep.subr.mxu0 0.0
    %259 = vmatpush1.msra.mxu0 0.0
    %260 = vmatprep.subr.mxu0 0.0
    %261 = vmatpush1.msra.mxu0 0.0
    %262 = vmatprep.subr.mxu0 0.0
    %263 = vmatpush1.msra.mxu0 0.0
    %264 = vmatprep.subr.mxu0 0.0
    %265 = vmatpush1.msra.mxu0 0.0
    %266 = vmatprep.subr.mxu0 0.0
    %267 = vmatpush1.msra.mxu0 0.0
    %268 = vmatprep.subr.mxu0 0.0
    %269 = vmatpush1.msra.mxu0 0.0
    %270 = vmatprep.subr.mxu0 0.0
    %271 = vmatpush1.msra.mxu0 0.0
    %272 = vmatprep.subr.mxu0 0.0
    %273 = vmatpush1.msra.mxu0 0.0
    %274 = vmatprep.subr.mxu0 0.0
    %275 = vmatpush1.msra.mxu0 0.0
    %276 = vmatprep.subr.mxu0 0.0
    %277 = vmatpush1.msra.mxu0 0.0
    %278 = vmatprep.subr.mxu0 0.0
    %279 = vmatpush1.msra.mxu0 0.0
    %280 = vmatprep.subr.mxu0 0.0
    %281 = vmatpush1.msra.mxu0 0.0
    %282 = vmatprep.subr.mxu0 0.0
    %283 = vmatpush1.msra.mxu0 0.0
    %284 = vmatprep.subr.mxu0 0.0
    %285 = vmatpush1.msra.mxu0 0.0
    %286 = vmatprep.subr.mxu0 0.0
    %287 = vmatpush1.msra.mxu0 0.0
    %288 = vmatprep.subr.mxu0 0.0
    %289 = vmatpush1.msra.mxu0 0.0
    %290 = vmatprep.subr.mxu0 0.0
    %291 = vmatpush1.msra.mxu0 0.0
    %292 = vmatprep.subr.mxu0 0.0
    %293 = vmatpush1.msra.mxu0 0.0
    %294 = vmatprep.subr.mxu0 0.0
    %295 = vmatpush1.msra.mxu0 0.0
    %296 = vmatprep.subr.mxu0 0.0
    %297 = vmatpush1.msra.mxu0 0.0
    %298 = vmatprep.subr.mxu0 0.0
    %299 = vmatpush1.msra.mxu0 0.0
    %300 = vmatprep.subr.mxu0 0.0
    %301 = vmatpush1.msra.mxu0 0.0
    %302 = vmatprep.subr.mxu0 0.0
    %303 = vmatpush1.msra.mxu0 0.0
    %304 = vmatprep.mubr.f32.mxu0 0.0
    %305 = vmatmul.mubr.f32.gmra.mrb[0].mxu0 %v156
    %v306 = vpop.f32.mrb[0].mxu0
    %v307 = vadd.f32 %v239, %v306
    %v308 = vpop.f32.mrb[0].mxu0
    %309 = vmatprep.mubr.f32.mxu0 0.0
    %310 = vmatmul.mubr.f32.gmra.mrb[0].mxu0 %v159
    %v311 = vpop.f32.mrb[0].mxu0
    %v312 = vadd.f32 %v239, %v311
    %v313 = vpop.f32.mrb[0].mxu0
    %314 = vdwg.mxu0
    %v317 = vunpack.c.l.s4 1966171168
    %v318 = vunpack.c.0.s8 %v317
    %v319 = vlaneseq
    %v320 = vshrl.u32 %v319, 7
    %v321 = vsub.s32 %v318, %v320
    %v322 = vrot.slane %v148, %v321
    %v323 = vcombine.high %v322, %v322
    %v325 = vunpack.c.l.s4 1966171168
    %v326 = vunpack.c.0.s8 %v325
    %v327 = vlaneseq
    %v328 = vshrl.u32 %v327, 7
    %v329 = vsub.s32 %v326, %v328
    %v330 = vrot.slane %v322, %v329
    %v332 = vunpack.c.l.s4 1966171168
    %v333 = vunpack.c.0.s8 %v332
    %v334 = vlaneseq
    %v335 = vshrl.u32 %v334, 7
    %v336 = vsub.s32 %v333, %v335
    %v337 = vrot.slane %v323, %v336
    %v338 = vlaneseq
    %v339 = vshrl.u32 %v338, 7
    %v340 = vsub.s32 0, %v339
    %v341 = vrot.slane %v330, %v340
    %v342 = vlaneseq
    %v343 = vshrl.u32 %v342, 7
    %v344 = vsub.s32 0, %v343
    %v345 = vrot.slane %v337, %v344
    %v348 = vmul.f32 %v341, %v228
    %v349 = vmul.f32 %v345, %v233
    %v351 = vsel %vm77, %v348, 0
    %v354 = vsel %vm77, %v349, 0
    %356 = vmatprep.subr.mxu0 0.0
    %357 = vmatpush1.msra.mxu0 %v68
    %358 = vmatprep.subr.mxu0 0.0
    %359 = vmatpush1.msra.mxu0 %v69
    %360 = vmatprep.subr.mxu0 0.0
    %361 = vmatpush1.msra.mxu0 %v70
    %362 = vmatprep.subr.mxu0 0.0
    %363 = vmatpush1.msra.mxu0 %v71
    %364 = vmatprep.subr.mxu0 0.0
    %365 = vmatpush1.msra.mxu0 0.0
    %366 = vmatprep.subr.mxu0 0.0
    %367 = vmatpush1.msra.mxu0 0.0
    %368 = vmatprep.subr.mxu0 0.0
    %369 = vmatpush1.msra.mxu0 0.0
    %370 = vmatprep.subr.mxu0 0.0
    %371 = vmatpush1.msra.mxu0 0.0
    %372 = vmatprep.subr.mxu0 0.0
    %373 = vmatpush1.msra.mxu0 0.0
    %374 = vmatprep.subr.mxu0 0.0
    %375 = vmatpush1.msra.mxu0 0.0
    %376 = vmatprep.subr.mxu0 0.0
    %377 = vmatpush1.msra.mxu0 0.0
    %378 = vmatprep.subr.mxu0 0.0
    %379 = vmatpush1.msra.mxu0 0.0
    %380 = vmatprep.subr.mxu0 0.0
    %381 = vmatpush1.msra.mxu0 0.0
    %382 = vmatprep.subr.mxu0 0.0
    %383 = vmatpush1.msra.mxu0 0.0
    %384 = vmatprep.subr.mxu0 0.0
    %385 = vmatpush1.msra.mxu0 0.0
    %386 = vmatprep.subr.mxu0 0.0
    %387 = vmatpush1.msra.mxu0 0.0
    %388 = vmatprep.subr.mxu0 0.0
    %389 = vmatpush1.msra.mxu0 0.0
    %390 = vmatprep.subr.mxu0 0.0
    %391 = vmatpush1.msra.mxu0 0.0
    %392 = vmatprep.subr.mxu0 0.0
    %393 = vmatpush1.msra.mxu0 0.0
    %394 = vmatprep.subr.mxu0 0.0
    %395 = vmatpush1.msra.mxu0 0.0
    %396 = vmatprep.subr.mxu0 0.0
    %397 = vmatpush1.msra.mxu0 0.0
    %398 = vmatprep.subr.mxu0 0.0
    %399 = vmatpush1.msra.mxu0 0.0
    %400 = vmatprep.subr.mxu0 0.0
    %401 = vmatpush1.msra.mxu0 0.0
    %402 = vmatprep.subr.mxu0 0.0
    %403 = vmatpush1.msra.mxu0 0.0
    %404 = vmatprep.subr.mxu0 0.0
    %405 = vmatpush1.msra.mxu0 0.0
    %406 = vmatprep.subr.mxu0 0.0
    %407 = vmatpush1.msra.mxu0 0.0
    %408 = vmatprep.subr.mxu0 0.0
    %409 = vmatpush1.msra.mxu0 0.0
    %410 = vmatprep.subr.mxu0 0.0
    %411 = vmatpush1.msra.mxu0 0.0
    %412 = vmatprep.subr.mxu0 0.0
    %413 = vmatpush1.msra.mxu0 0.0
    %414 = vmatprep.subr.mxu0 0.0
    %415 = vmatpush1.msra.mxu0 0.0
    %416 = vmatprep.subr.mxu0 0.0
    %417 = vmatpush1.msra.mxu0 0.0
    %418 = vmatprep.subr.mxu0 0.0
    %419 = vmatpush1.msra.mxu0 0.0
    %420 = vmatprep.mubr.f32.mxu0 0.0
    %421 = vmatmul.mubr.f32.gmra.mrb[0].mxu0 %v351
    %v422 = vpop.f32.mrb[0].mxu0
    %v423 = vadd.f32 0.0, %v422
    %v424 = vpop.f32.mrb[0].mxu0
    %425 = vmatprep.mubr.f32.mxu0 0.0
    %426 = vmatmul.mubr.f32.gmra.mrb[0].mxu0 %v354
    %v427 = vpop.f32.mrb[0].mxu0
    %v428 = vadd.f32 0.0, %v427
    %v429 = vpop.f32.mrb[0].mxu0
    %430 = vdwg.mxu0
    %v431 = vlaneseq
    %v432 = vshrl.u32 %v431, 7
    %v433 = vsub.s32 0, %v432
    %v434 = vrot.slane %v44, %v433
    %436 = vbcast.lane.b32.xlu0 %v434, 256
    %v437 = vpop.permute.xlu0 %436
    %v438 = vlaneseq
    %v439 = vshrl.u32 %v438, 7
    %v440 = vsub.s32 1, %v439
    %v441 = vrot.slane %v44, %v440
    %443 = vbcast.lane.b32.xlu0 %v441, 256
    %v444 = vpop.permute.xlu0 %443
    %vm445 = vcmp.ne.s32.totalorder %v437, 0
    %vm446 = vcmp.ne.s32.totalorder %v444, 0
    %v447 = vsel %vm445, 1, 0
    %v448 = vsel %vm446, 1, 0
    %vm449 = vcmp.eq.s32.totalorder %v447, 1
    %vm450 = vcmp.eq.s32.totalorder %v448, 1
    %v451 = vsel %vm449, -1e+30, %v423
    %v452 = vsel %vm450, -1e+30, %v428
    %vm453 = vcmask 31744
    %v454 = vsel %vm453, %v451, -inf
    %v455 = vrot.slane %v454, 4
    %v456 = vmax.f32 %v454, %v455
    %v457 = vrot.slane %v456, 2
    %v458 = vmax.f32 %v456, %v457
    %v459 = vrot.slane %v458, 1
    %v460 = vmax.f32 %v458, %v459
    %v461 = vsel %vm453, %v452, -inf
    %v462 = vrot.slane %v461, 4
    %v463 = vmax.f32 %v461, %v462
    %v464 = vrot.slane %v463, 2
    %v465 = vmax.f32 %v463, %v464
    %v466 = vrot.slane %v465, 1
    %v467 = vmax.f32 %v465, %v466
    %v468 = vmax.f32 %v460, 0.0
    %v469 = vmax.f32 %v467, 0.0
    %v470 = vsub.f32 %v451, %v468
    %v471 = vsub.f32 %v452, %v469
    %v472 = vmul.f32 %v470, 1.442695
    %v473 = vpow.pop %v472
    %v474 = vmul.f32 %v471, 1.442695
    %v475 = vpow.pop %v474
    %v476 = vsel %vm453, %v473, 0.0
    %v477 = vrot.slane %v476, 4
    %v478 = vadd.f32 %v476, %v477
    %v479 = vrot.slane %v478, 2
    %v480 = vadd.f32 %v478, %v479
    %v481 = vrot.slane %v480, 1
    %v482 = vadd.f32 %v480, %v481
    %v483 = vsel %vm453, %v475, 0.0
    %v484 = vrot.slane %v483, 4
    %v485 = vadd.f32 %v483, %v484
    %v486 = vrot.slane %v485, 2
    %v487 = vadd.f32 %v485, %v486
    %v488 = vrot.slane %v487, 1
    %v489 = vadd.f32 %v487, %v488
    %v490 = vsub.f32 0.0, %v468
    %v491 = vsub.f32 0.0, %v469
    %v492 = vmul.f32 %v490, 1.442695
    %v493 = vpow.pop %v492
    %v494 = vmul.f32 %v491, 1.442695
    %v495 = vpow.pop %v494
    %v496 = vadd.f32 %v482, %v493
    %v497 = vadd.f32 %v489, %v495
    %v498 = vrcp.pop %v496
    %v499 = vrcp.pop %v497
    %v500 = vmul.f32 %v473, %v498
    %v501 = vmul.f32 %v475, %v499
    %v503 = vsel %vm453, %v500, 0
    %v506 = vsel %vm453, %v501, 0
    %vm508 = vcmask 1043456
    %v510 = vsel %vm508, %v72, 0
    %512 = vmatprep.subr.mxu0 0.0
    %513 = vmatpush1.msra.mxu0 %v510
    %514 = vmatprep.subr.mxu0 0.0
    %515 = vmatpush1.msra.mxu0 0.0
    %516 = vmatprep.subr.mxu0 0.0
    %517 = vmatpush1.msra.mxu0 0.0
    %518 = vmatprep.subr.mxu0 0.0
    %519 = vmatpush1.msra.mxu0 0.0
    %520 = vmatprep.subr.mxu0 0.0
    %521 = vmatpush1.msra.mxu0 0.0
    %522 = vmatprep.subr.mxu0 0.0
    %523 = vmatpush1.msra.mxu0 0.0
    %524 = vmatprep.subr.mxu0 0.0
    %525 = vmatpush1.msra.mxu0 0.0
    %526 = vmatprep.subr.mxu0 0.0
    %527 = vmatpush1.msra.mxu0 0.0
    %528 = vmatprep.subr.mxu0 0.0
    %529 = vmatpush1.msra.mxu0 0.0
    %530 = vmatprep.subr.mxu0 0.0
    %531 = vmatpush1.msra.mxu0 0.0
    %532 = vmatprep.subr.mxu0 0.0
    %533 = vmatpush1.msra.mxu0 0.0
    %534 = vmatprep.subr.mxu0 0.0
    %535 = vmatpush1.msra.mxu0 0.0
    %536 = vmatprep.subr.mxu0 0.0
    %537 = vmatpush1.msra.mxu0 0.0
    %538 = vmatprep.subr.mxu0 0.0
    %539 = vmatpush1.msra.mxu0 0.0
    %540 = vmatprep.subr.mxu0 0.0
    %541 = vmatpush1.msra.mxu0 0.0
    %542 = vmatprep.subr.mxu0 0.0
    %543 = vmatpush1.msra.mxu0 0.0
    %544 = vmatprep.subr.mxu0 0.0
    %545 = vmatpush1.msra.mxu0 0.0
    %546 = vmatprep.subr.mxu0 0.0
    %547 = vmatpush1.msra.mxu0 0.0
    %548 = vmatprep.subr.mxu0 0.0
    %549 = vmatpush1.msra.mxu0 0.0
    %550 = vmatprep.subr.mxu0 0.0
    %551 = vmatpush1.msra.mxu0 0.0
    %552 = vmatprep.subr.mxu0 0.0
    %553 = vmatpush1.msra.mxu0 0.0
    %554 = vmatprep.subr.mxu0 0.0
    %555 = vmatpush1.msra.mxu0 0.0
    %556 = vmatprep.subr.mxu0 0.0
    %557 = vmatpush1.msra.mxu0 0.0
    %558 = vmatprep.subr.mxu0 0.0
    %559 = vmatpush1.msra.mxu0 0.0
    %560 = vmatprep.subr.mxu0 0.0
    %561 = vmatpush1.msra.mxu0 0.0
    %562 = vmatprep.subr.mxu0 0.0
    %563 = vmatpush1.msra.mxu0 0.0
    %564 = vmatprep.subr.mxu0 0.0
    %565 = vmatpush1.msra.mxu0 0.0
    %566 = vmatprep.subr.mxu0 0.0
    %567 = vmatpush1.msra.mxu0 0.0
    %568 = vmatprep.subr.mxu0 0.0
    %569 = vmatpush1.msra.mxu0 0.0
    %570 = vmatprep.subr.mxu0 0.0
    %571 = vmatpush1.msra.mxu0 0.0
    %572 = vmatprep.subr.mxu0 0.0
    %573 = vmatpush1.msra.mxu0 0.0
    %574 = vmatprep.subr.mxu0 0.0
    %575 = vmatpush1.msra.mxu0 0.0
    %576 = vmatprep.mubr.f32.mxu0 0.0
    %577 = vmatmul.mubr.f32.gmra.mrb[0].mxu0 %v503
    %v578 = vpop.f32.mrb[0].mxu0
    %v579 = vadd.f32 0.0, %v578
    %v580 = vpop.f32.mrb[0].mxu0
    %581 = vmatprep.mubr.f32.mxu0 0.0
    %582 = vmatmul.mubr.f32.gmra.mrb[0].mxu0 %v506
    %v583 = vpop.f32.mrb[0].mxu0
    %v584 = vadd.f32 0.0, %v583
    %v585 = vpop.f32.mrb[0].mxu0
    %586 = vdwg.mxu0
    %v587 = vmul.f32 %v579, %v307
    %v588 = vmul.f32 %v584, %v312
    %v589 = vsel %vm77, %v587, 0.0
    %v590 = vrot.slane %v589, 4
    %v591 = vadd.f32 %v589, %v590
    %v592 = vrot.slane %v591, 2
    %v593 = vadd.f32 %v591, %v592
    %v594 = vrot.slane %v593, 1
    %v595 = vadd.f32 %v593, %v594
    %v596 = vsel %vm77, %v588, 0.0
    %v597 = vrot.slane %v596, 4
    %v598 = vadd.f32 %v596, %v597
    %v599 = vrot.slane %v598, 2
    %v600 = vadd.f32 %v598, %v599
    %v601 = vrot.slane %v600, 1
    %v602 = vadd.f32 %v600, %v601
    %v603 = vlaneseq
    %v604 = vshrl.u32 %v603, 7
    %v605 = vsub.s32 0, %v604
    %v606 = vrot.slane %v67, %v605
    %vm609 = vcmask 1041409
    %v610 = vsel %vm609, %v602, %v595
    %v611 = vsel %vm77, %v610, 0
    %613 = vmatprep.subr.mxu0 0.0
    %614 = vmatpush1.msra.mxu0 %v60
    %615 = vmatprep.subr.mxu0 0.0
    %616 = vmatpush1.msra.mxu0 %v61
    %617 = vmatprep.subr.mxu0 0.0
    %618 = vmatpush1.msra.mxu0 %v62
    %619 = vmatprep.subr.mxu0 0.0
    %620 = vmatpush1.msra.mxu0 %v63
    %621 = vmatprep.subr.mxu0 0.0
    %622 = vmatpush1.msra.mxu0 0.0
    %623 = vmatprep.subr.mxu0 0.0
    %624 = vmatpush1.msra.mxu0 0.0
    %625 = vmatprep.subr.mxu0 0.0
    %626 = vmatpush1.msra.mxu0 0.0
    %627 = vmatprep.subr.mxu0 0.0
    %628 = vmatpush1.msra.mxu0 0.0
    %629 = vmatprep.subr.mxu0 0.0
    %630 = vmatpush1.msra.mxu0 0.0
    %631 = vmatprep.subr.mxu0 0.0
    %632 = vmatpush1.msra.mxu0 0.0
    %633 = vmatprep.subr.mxu0 0.0
    %634 = vmatpush1.msra.mxu0 0.0
    %635 = vmatprep.subr.mxu0 0.0
    %636 = vmatpush1.msra.mxu0 0.0
    %637 = vmatprep.subr.mxu0 0.0
    %638 = vmatpush1.msra.mxu0 0.0
    %639 = vmatprep.subr.mxu0 0.0
    %640 = vmatpush1.msra.mxu0 0.0
    %641 = vmatprep.subr.mxu0 0.0
    %642 = vmatpush1.msra.mxu0 0.0
    %643 = vmatprep.subr.mxu0 0.0
    %644 = vmatpush1.msra.mxu0 0.0
    %645 = vmatprep.subr.mxu0 0.0
    %646 = vmatpush1.msra.mxu0 0.0
    %647 = vmatprep.subr.mxu0 0.0
    %648 = vmatpush1.msra.mxu0 0.0
    %649 = vmatprep.subr.mxu0 0.0
    %650 = vmatpush1.msra.mxu0 0.0
    %651 = vmatprep.subr.mxu0 0.0
    %652 = vmatpush1.msra.mxu0 0.0
    %653 = vmatprep.subr.mxu0 0.0
    %654 = vmatpush1.msra.mxu0 0.0
    %655 = vmatprep.subr.mxu0 0.0
    %656 = vmatpush1.msra.mxu0 0.0
    %657 = vmatprep.subr.mxu0 0.0
    %658 = vmatpush1.msra.mxu0 0.0
    %659 = vmatprep.subr.mxu0 0.0
    %660 = vmatpush1.msra.mxu0 0.0
    %661 = vmatprep.subr.mxu0 0.0
    %662 = vmatpush1.msra.mxu0 0.0
    %663 = vmatprep.subr.mxu0 0.0
    %664 = vmatpush1.msra.mxu0 0.0
    %665 = vmatprep.subr.mxu0 0.0
    %666 = vmatpush1.msra.mxu0 0.0
    %667 = vmatprep.subr.mxu0 0.0
    %668 = vmatpush1.msra.mxu0 0.0
    %669 = vmatprep.subr.mxu0 0.0
    %670 = vmatpush1.msra.mxu0 0.0
    %671 = vmatprep.subr.mxu0 0.0
    %672 = vmatpush1.msra.mxu0 0.0
    %673 = vmatprep.subr.mxu0 0.0
    %674 = vmatpush1.msra.mxu0 0.0
    %675 = vmatprep.subr.mxu0 0.0
    %676 = vmatpush1.msra.mxu0 0.0
    %677 = vmatprep.mubr.f32.mxu0 0.0
    %678 = vmatmul.mubr.f32.gmra.mrb[0].mxu0 %v611
    %v679 = vpop.f32.mrb[0].mxu0
    %v680 = vadd.f32 %v606, %v679
    %v681 = vpop.f32.mrb[0].mxu0
    %682 = vdwg.mxu0
    %vm683 = vcmask 254976
    %684 = vst.msk [vmem:[#allocation5] sm:$0x3] %vm683, %v680
    // Predicated region
    $region34: #{tpu_custom_call.1} parent=1 // pred_check
      _
    $region35: #{tpu_custom_call.1} parent=1 // pred_check_branch
      %686 = sbr.rel (0) target = $region37
    $region36: #{tpu_custom_call.1} parent=1 // pred_region
      %s688 = ssub.s32 32, 32
      %689 = vsyncadd [#allocation4], %s688
      %s691 = sshll.u32 [#allocation5], 4
      %s692 = int_to_ptr.vmem [resolvable:$true] %s691
      %694 = dma.vmem_to_hbm [thread:$0]  %s692, 32, %s7, [#allocation4]
    $region37: #{tpu_custom_call.1} parent=1 // pred_fallthru
      _
    // Predicated region
    $region38: #{tpu_custom_call.1} parent=1 // pred_check
      _
    $region39: #{tpu_custom_call.1} parent=1 // pred_check_branch
      %696 = sbr.rel (0) target = $region41
    $region40: #{tpu_custom_call.1} parent=1 // pred_region
      %697 = dma.done [#allocation4], 32
    $region41: #{tpu_custom_call.1} parent=1 // pred_fallthru
      _
    %698 = vsyncpa [#allocation3], 1
    %699 = vsyncpa [#allocation4], 1

</llo_original>
